<compile_context>
chip_gen: v6e
topology: v6e:2x2x1
jax: 0.10.0
libtpu: 0.0.40
codegen_flags: <defaults>
</compile_context>

<pallas_src>
import jax
import jax.numpy as jnp
from jax.experimental import pallas as pl
from jax.experimental.pallas import tpu as pltpu


def _get_freqs_cos_sin(dim: int, max_len: int, base_freq: int):
    """JAX equivalent of _get_freqs, as (cos, sin) of shape (max_len, dim//2)."""
    exponents = 2.0 * jnp.arange(0, dim // 2, dtype=jnp.float32) / dim
    freqs = 1.0 / (base_freq ** exponents)                      # (dim//2,)
    positions = jnp.arange(1, max_len + 1, dtype=jnp.float32)   # 1-indexed, as in torch
    theta = jnp.outer(positions, freqs)                         # (max_len, dim//2)
    return jnp.cos(theta), jnp.sin(theta)


def _rope_kernel(q_ref, v_ref, coef_ref, qo_ref, vo_ref):
    """Fused interleaved RoPE rotation on [TB, TN] tiles (TN even, interleaved).

    out[f] = x[f]*C[f] + x[f+1]*Sm[f] + x[f-1]*Sp[f]
      C[f]  = cos(theta[f//2])
      Sm[f] = -sin(theta[f//2]) at even f, 0 at odd f
      Sp[f] = +sin(theta[f//2]) at odd f, 0 at even f
    The zeros in Sm/Sp also kill the roll wrap-around terms at tile edges
    (tile boundaries are pair boundaries), so no in-kernel masking is needed.
    """
    coef = coef_ref[...]                 # (3, TN) f32
    c = coef[0:1, :]                     # broadcast along sublanes
    sm = coef[1:2, :]
    sp = coef[2:3, :]
    n = q_ref.shape[-1]

    def rotate(x_ref, o_ref):
        x = x_ref[...].astype(jnp.float32)             # (TB, TN)
        x_next = pltpu.roll(x, shift=n - 1, axis=1)    # x[f+1] at position f
        x_prev = pltpu.roll(x, shift=1, axis=1)        # x[f-1] at position f
        o_ref[...] = (x * c + x_next * sm + x_prev * sp).astype(o_ref.dtype)

    rotate(q_ref, qo_ref)
    rotate(v_ref, vo_ref)


def _vmem_capacity_bytes() -> int:
    """Per-core VMEM capacity; conservative (v7x) fallback if the query fails."""
    try:
        return int(pltpu.get_tpu_info().vmem_capacity_bytes)
    except Exception:
        return 64 * 1024 * 1024


def _choose_tiles(bh: int, n: int, itemsize: int, target_bytes: int):
    """Pick (TB, TN): per-array tile <= target, lane-dense, dtype-aware rows,
    valid block shapes (TB mult of 8*packing or == BH; TN mult of 128 or == N),
    and at least 2 grid steps when the shape allows it (v7x megacore)."""
    row_mult = 8 * max(1, 4 // itemsize)      # 8 f32, 16 bf16, 32 int8/fp8

    row_cands = sorted(
        {bh} | {tb for tb in range(row_mult, bh, row_mult) if bh % tb == 0},
        reverse=True)
    lane_cands = sorted(
        {n} | {tn for tn in range(128, n, 128) if n % tn == 0},
        reverse=True)

    min_tb = row_cands[-1]
    # Largest lane tile for which some row tile keeps the block within target.
    tn = lane_cands[-1]
    for cand in lane_cands:
        if min_tb * cand * itemsize <= target_bytes:
            tn = cand
            break
    # Largest row tile that keeps the block within target for that lane tile.
    tb = min_tb
    for cand in row_cands:
        if cand * tn * itemsize <= target_bytes:
            tb = cand
            break

    # Guarantee >= 2 grid steps so both v7x TensorCores get work.
    if (bh // tb) * (n // tn) < 2:
        if n % 256 == 0:                       # split lanes (keeps 128-multiple)
            tn = n // 2
        elif bh % (2 * row_mult) == 0:         # else split rows
            tb = bh // 2
    return tb, tn


@jax.jit
def rotary_embeddings(query, values, cos, sin):
    """query, values: [B, H, L, E]; cos, sin: [L, E//2]. Returns rotated (q, v)."""
    B, H, L, E = query.shape
    BH = B * H
    N = L * E

    # Free (contiguous) reshapes: keep interleaved layout, flatten L and E.
    q2 = query.reshape(BH, N)
    v2 = values.reshape(BH, N)

    # Packed coefficient rows (tiny one-time work outside the kernel).
    zeros = jnp.zeros_like(sin)
    c_row = jnp.repeat(cos, 2, axis=-1).reshape(N)
    sm_row = jnp.stack([-sin, zeros], axis=-1).reshape(N)
    sp_row = jnp.stack([zeros, sin], axis=-1).reshape(N)
    coef = jnp.stack([c_row, sm_row, sp_row], axis=0).astype(jnp.float32)  # (3, N)

    itemsize = jnp.dtype(query.dtype).itemsize

    # Per-generation VMEM budget: ~3/4 of physical capacity (48 MiB on v7x,
    # 96 MiB on v5e/v6e), per-array tile target ~1/16 of that.
    vmem_cap = _vmem_capacity_bytes()
    vmem_limit = max(32 * 1024 * 1024, min((vmem_cap * 3) // 4, 96 * 1024 * 1024))
    target = max(512 * 1024, vmem_limit // 16)

    tb, tn = _choose_tiles(BH, N, itemsize, target)
    grid = (BH // tb, N // tn)

    row_spec = pl.BlockSpec((tb, tn), lambda i, j: (i, j))
    coef_spec = pl.BlockSpec((3, tn), lambda i, j: (0, j))
    out_sds = jax.ShapeDtypeStruct((BH, N), query.dtype)

    elems = 2 * BH * N
    cost = pl.CostEstimate(
        flops=5 * elems,
        transcendentals=0,
        bytes_accessed=2 * elems * itemsize + 3 * N * 4,
    )

    # TODO(synk): could add input_output_aliases={0: 0, 1: 1} when the caller
    # no longer needs the pre-rotation q/v to cut peak HBM allocation.
    qo, vo = pl.pallas_call(
        _rope_kernel,
        out_shape=(out_sds, out_sds),
        grid=grid,
        in_specs=[row_spec, row_spec, coef_spec],
        out_specs=(row_spec, row_spec),
        compiler_params=pltpu.CompilerParams(
            dimension_semantics=("parallel", "parallel"),
            vmem_limit_bytes=vmem_limit,
        ),
        cost_estimate=cost,
    )(q2, v2, coef)

    return qo.reshape(B, H, L, E), vo.reshape(B, H, L, E)


def _reference(query, values, cos, sin):
    """Pure-JAX reference matching the PyTorch semantics."""
    B, H, L, E = query.shape
    z = (cos + 1j * sin)[None, None, :, :]                       # (1,1,L,E//2)

    def rot(x):
        xr = x.astype(jnp.float32).reshape(B, H, L, E // 2, 2)
        zx = (xr[..., 0] + 1j * xr[..., 1]) * z
        out = jnp.stack([zx.real, zx.imag], axis=-1).reshape(B, H, L, E)
        return out.astype(x.dtype)

    return rot(query), rot(values)


if __name__ == "__main__":
    # Small shapes consistent with the module: emb_dim=32, block_len=8.
    B, H, L, E = 2, 4, 8, 32
    base_freq = 10000

    cos, sin = _get_freqs_cos_sin(E, max_len=L, base_freq=base_freq)

    key = jax.random.PRNGKey(0)
    kq, kv = jax.random.split(key)
    query = jax.random.normal(kq, (B, H, L, E), dtype=jnp.float32)
    values = jax.random.normal(kv, (B, H, L, E), dtype=jnp.float32)

    q_out, v_out = rotary_embeddings(query, values, cos, sin)
    jax.block_until_ready((q_out, v_out))

    q_ref, v_ref = _reference(query, values, cos, sin)
    assert q_out.shape == (B, H, L, E) and v_out.shape == (B, H, L, E)
    assert q_out.dtype == query.dtype and v_out.dtype == values.dtype
    assert jnp.allclose(q_out, q_ref, atol=1e-5, rtol=1e-5)
    assert jnp.allclose(v_out, v_ref, atol=1e-5, rtol=1e-5)

    print("KERNEL_OK")
</pallas_src>

<mosaic_0001>
module attributes {stable_mosaic.version = 11 : i64} {
  func.func @_rope_kernel(%arg0: i32, %arg1: i32, %arg2: memref<8x128xf32, #tpu.memory_space<vmem>>, %arg3: memref<8x128xf32, #tpu.memory_space<vmem>>, %arg4: memref<3x128xf32, #tpu.memory_space<vmem>>, %arg5: memref<8x128xf32, #tpu.memory_space<vmem>>, %arg6: memref<8x128xf32, #tpu.memory_space<vmem>>) attributes {dimension_semantics = [#tpu.dimension_semantics<parallel>, #tpu.dimension_semantics<parallel>], iteration_bounds = array<i64: 1, 2>, scalar_prefetch = 0 : i64, scratch_operands = 0 : i64, tpu.core_type = #tpu.core_type<tc>, window_params = [{transform_indices = @transform_0, window_bounds = array<i64: 8, 128>}, {transform_indices = @transform_1, window_bounds = array<i64: 8, 128>}, {transform_indices = @transform_2, window_bounds = array<i64: 3, 128>}, {transform_indices = @transform_3, window_bounds = array<i64: 8, 128>}, {transform_indices = @transform_4, window_bounds = array<i64: 8, 128>}]} {
    %c0 = arith.constant 0 : index
    %c0_0 = arith.constant 0 : index
    %0 = vector.load %arg4[%c0, %c0_0] : memref<3x128xf32, #tpu.memory_space<vmem>>, vector<3x128xf32>
    %1 = vector.extract_strided_slice %0 {offsets = [0, 0], sizes = [1, 128], strides = [1, 1]} : vector<3x128xf32> to vector<1x128xf32>
    %2 = vector.extract_strided_slice %0 {offsets = [1, 0], sizes = [1, 128], strides = [1, 1]} : vector<3x128xf32> to vector<1x128xf32>
    %3 = vector.extract_strided_slice %0 {offsets = [2, 0], sizes = [1, 128], strides = [1, 1]} : vector<3x128xf32> to vector<1x128xf32>
    %c0_1 = arith.constant 0 : index
    %c0_2 = arith.constant 0 : index
    %4 = vector.load %arg2[%c0_1, %c0_2] : memref<8x128xf32, #tpu.memory_space<vmem>>, vector<8x128xf32>
    %c127_i32 = arith.constant 127 : i32
    %5 = tpu.dynamic_rotate %4 by %c127_i32 dim 1 : vector<8x128xf32>, i32 -> vector<8x128xf32>
    %c1_i32 = arith.constant 1 : i32
    %6 = tpu.dynamic_rotate %4 by %c1_i32 dim 1 : vector<8x128xf32>, i32 -> vector<8x128xf32>
    %7 = vector.broadcast %1 : vector<1x128xf32> to vector<8x128xf32>
    %8 = arith.mulf %4, %7 : vector<8x128xf32>
    %9 = vector.broadcast %2 : vector<1x128xf32> to vector<8x128xf32>
    %10 = arith.mulf %5, %9 : vector<8x128xf32>
    %11 = arith.addf %8, %10 : vector<8x128xf32>
    %12 = vector.broadcast %3 : vector<1x128xf32> to vector<8x128xf32>
    %13 = arith.mulf %6, %12 : vector<8x128xf32>
    %14 = arith.addf %11, %13 : vector<8x128xf32>
    %c0_3 = arith.constant 0 : index
    %c0_4 = arith.constant 0 : index
    %15 = vector.load %arg5[%c0_3, %c0_4] : memref<8x128xf32, #tpu.memory_space<vmem>>, vector<8x128xf32>
    tpu.vector_store %arg5[%c0_3, %c0_4], %14 {strides = array<i32>} : memref<8x128xf32, #tpu.memory_space<vmem>>, vector<8x128xf32>,
    %c0_5 = arith.constant 0 : index
    %c0_6 = arith.constant 0 : index
    %16 = vector.load %arg3[%c0_5, %c0_6] : memref<8x128xf32, #tpu.memory_space<vmem>>, vector<8x128xf32>
    %c127_i32_7 = arith.constant 127 : i32
    %17 = tpu.dynamic_rotate %16 by %c127_i32_7 dim 1 : vector<8x128xf32>, i32 -> vector<8x128xf32>
    %c1_i32_8 = arith.constant 1 : i32
    %18 = tpu.dynamic_rotate %16 by %c1_i32_8 dim 1 : vector<8x128xf32>, i32 -> vector<8x128xf32>
    %19 = vector.broadcast %1 : vector<1x128xf32> to vector<8x128xf32>
    %20 = arith.mulf %16, %19 : vector<8x128xf32>
    %21 = vector.broadcast %2 : vector<1x128xf32> to vector<8x128xf32>
    %22 = arith.mulf %17, %21 : vector<8x128xf32>
    %23 = arith.addf %20, %22 : vector<8x128xf32>
    %24 = vector.broadcast %3 : vector<1x128xf32> to vector<8x128xf32>
    %25 = arith.mulf %18, %24 : vector<8x128xf32>
    %26 = arith.addf %23, %25 : vector<8x128xf32>
    %c0_9 = arith.constant 0 : index
    %c0_10 = arith.constant 0 : index
    %27 = vector.load %arg6[%c0_9, %c0_10] : memref<8x128xf32, #tpu.memory_space<vmem>>, vector<8x128xf32>
    tpu.vector_store %arg6[%c0_9, %c0_10], %26 {strides = array<i32>} : memref<8x128xf32, #tpu.memory_space<vmem>>, vector<8x128xf32>,
    return
  }
  func.func @transform_0(%arg0: i32, %arg1: i32) -> (i32, i32) {
    %c0_i32 = arith.constant 0 : i32
    return %arg0, %arg1 : i32, i32
  }
  func.func @transform_1(%arg0: i32, %arg1: i32) -> (i32, i32) {
    %c0_i32 = arith.constant 0 : i32
    return %arg0, %arg1 : i32, i32
  }
  func.func @transform_2(%arg0: i32, %arg1: i32) -> (i32, i32) {
    %c0_i32 = arith.constant 0 : i32
    %c0_i32_0 = arith.constant 0 : i32
    return %c0_i32, %arg1 : i32, i32
  }
  func.func @transform_3(%arg0: i32, %arg1: i32) -> (i32, i32) {
    %c0_i32 = arith.constant 0 : i32
    return %arg0, %arg1 : i32, i32
  }
  func.func @transform_4(%arg0: i32, %arg1: i32) -> (i32, i32) {
    %c0_i32 = arith.constant 0 : i32
    return %arg0, %arg1 : i32, i32
  }
}

</mosaic_0001>

<llo_original>
// kernel: rotary_embeddings.1
$region0: #{rotary_embeddings.1}
  #allocation0 [shape = 'u32[]', space=smem, size = 0x4, offset = 0x4, fixed_abs, tag = 'smem constant byte address 0x4 - core index']
  #allocation1 [shape = 'u32[144,128]{1,0:T(1,128)}', space=vmem, size = 0x12000, scoped, tag = 'internal scratch']
  %s0 = inlined_call_operand.vmem [shape: f32[8,256], index: 0, kind: input, shape index: {}]
  %s1 = inlined_call_operand.vmem [shape: f32[8,256], index: 1, kind: input, shape index: {}]
  %s2 = inlined_call_operand.vmem [shape: f32[3,256], index: 2, kind: input, shape index: {}]
  %s3 = inlined_call_operand.vmem [shape: f32[8,256], index: 3, kind: output, shape index: {0}]
  %s4 = inlined_call_operand.vmem [shape: f32[8,256], index: 4, kind: output, shape index: {1}]
  %5 = xla_tuple %s3, %s4
  %s6 = sld [smem:[#allocation0]]
  $region53: #{rotary_embeddings.1} parent=0
    _
  %s8 = ssub.s32 1, %s6
  %s9 = scalar_select 0, %s8, %s6
  loop: start=0, step=1, limit=4
  $region2: #{rotary_embeddings.1} parent=0 // loop_pre_header
    _
  $region3: #{rotary_embeddings.1} parent=0 // loop_header
    %s11 = sphi 0, %s15
    %p12 = scmp.ge.s32.totalorder %s11, 4
    %s18 = sphi 0, %s30
    %s19 = sphi 0, %s26
    %s20 = sphi 0, %s18
    %s21 = sphi 0, %s19
    %s22 = sphi 0, %s20
    %s23 = sphi 0, %s21
    %s35 = sphi 0, %s37
    %s38 = sphi 0, %s35
    %s39 = sphi 0, %s38
    %s55 = sphi 0, %s39
    %s63 = sphi 0, %s65
    %s66 = sphi 0, %s63
    %s67 = sphi 0, %s66
    %s83 = sphi 0, %s67
    %s89 = sphi 0, %s91
    %s92 = sphi 0, %s89
    %s93 = sphi 0, %s92
    %s109 = sphi 0, %s93
    %s117 = sphi 0, %s119
    %s120 = sphi 0, %s117
    %s121 = sphi 0, %s120
    %s137 = sphi 0, %s121
    %s145 = sphi 0, %s147
    %s148 = sphi 0, %s145
    %s149 = sphi 0, %s148
    %s165 = sphi 0, %s149
  $region4: #{rotary_embeddings.1} parent=0 // loop_header_branch
    %14 = sbr.rel (%p12) target = $region8
  $region5: #{rotary_embeddings.1} parent=0 // loop_body
    %s16 = ssub.s32 %s11, 1
    %s17 = ssub.s32 %s11, 2
    %s24 = sadd.s32 1, %s19
    %p25 = scmp.ge.s32.totalorder %s24, 2
    %s26 = scalar_select %p25, 0, %s24
    %s27 = sadd.s32 1, %s18
    %s28 = scalar_select %p25, %s27, %s18
    %p29 = scmp.ge.s32.totalorder %s28, 1
    %s30 = scalar_select %p29, 0, %s28
    %s31 = ssub.s32 %s18, %s30
    %s32 = ssub.s32 %s19, %s26
    %s33 = sor.u32 %s31, %s32
    %p34 = scmp.eq.s32.totalorder %s33, 0
    %s36 = sadd.s32 %s35, 1
    %s37 = scalar_select %p34, %s35, %s36
    %p40 = pneg %p34
    %p41 = scmp.eq.s32.totalorder %s11, 1
    %p42 = por %p40, %p41
    %p43 = scmp.ne.s32.totalorder %s35, %s38
    %p44 = scmp.eq.s32.totalorder %s11, 0
    %p45 = por %p43, %p44
    %p46 = scmp.ne.s32.totalorder %s35, %s38
    %p47 = scmp.eq.s32.totalorder %s16, 1
    %p48 = por %p46, %p47
    %p49 = scmp.ne.s32.totalorder %s38, %s39
    %p50 = scmp.eq.s32.totalorder %s16, 0
    %p51 = por %p49, %p50
    %p52 = scmp.ne.s32.totalorder %s38, %s39
    %p53 = scmp.eq.s32.totalorder %s17, 1
    %p54 = por %p52, %p53
    %p56 = scmp.ne.s32.totalorder %s39, %s55
    %p57 = scmp.eq.s32.totalorder %s17, 0
    %p58 = por %p56, %p57
    %s59 = ssub.s32 %s18, %s30
    %s60 = ssub.s32 %s19, %s26
    %s61 = sor.u32 %s59, %s60
    %p62 = scmp.eq.s32.totalorder %s61, 0
    %s64 = sadd.s32 %s63, 1
    %s65 = scalar_select %p62, %s63, %s64
    %p68 = pneg %p62
    %p69 = scmp.eq.s32.totalorder %s11, 1
    %p70 = por %p68, %p69
    %p71 = scmp.ne.s32.totalorder %s63, %s66
    %p72 = scmp.eq.s32.totalorder %s11, 0
    %p73 = por %p71, %p72
    %p74 = scmp.ne.s32.totalorder %s63, %s66
    %p75 = scmp.eq.s32.totalorder %s16, 1
    %p76 = por %p74, %p75
    %p77 = scmp.ne.s32.totalorder %s66, %s67
    %p78 = scmp.eq.s32.totalorder %s16, 0
    %p79 = por %p77, %p78
    %p80 = scmp.ne.s32.totalorder %s66, %s67
    %p81 = scmp.eq.s32.totalorder %s17, 1
    %p82 = por %p80, %p81
    %p84 = scmp.ne.s32.totalorder %s67, %s83
    %p85 = scmp.eq.s32.totalorder %s17, 0
    %p86 = por %p84, %p85
    %s87 = ssub.s32 %s19, %s26
    %p88 = scmp.eq.s32.totalorder %s87, 0
    %s90 = sadd.s32 %s89, 1
    %s91 = scalar_select %p88, %s89, %s90
    %p94 = pneg %p88
    %p95 = scmp.eq.s32.totalorder %s11, 1
    %p96 = por %p94, %p95
    %p97 = scmp.ne.s32.totalorder %s89, %s92
    %p98 = scmp.eq.s32.totalorder %s11, 0
    %p99 = por %p97, %p98
    %p100 = scmp.ne.s32.totalorder %s89, %s92
    %p101 = scmp.eq.s32.totalorder %s16, 1
    %p102 = por %p100, %p101
    %p103 = scmp.ne.s32.totalorder %s92, %s93
    %p104 = scmp.eq.s32.totalorder %s16, 0
    %p105 = por %p103, %p104
    %p106 = scmp.ne.s32.totalorder %s92, %s93
    %p107 = scmp.eq.s32.totalorder %s17, 1
    %p108 = por %p106, %p107
    %p110 = scmp.ne.s32.totalorder %s93, %s109
    %p111 = scmp.eq.s32.totalorder %s17, 0
    %p112 = por %p110, %p111
    %s113 = ssub.s32 %s18, %s30
    %s114 = ssub.s32 %s19, %s26
    %s115 = sor.u32 %s113, %s114
    %p116 = scmp.eq.s32.totalorder %s115, 0
    %s118 = sadd.s32 %s117, 1
    %s119 = scalar_select %p116, %s117, %s118
    %p122 = pneg %p116
    %p123 = scmp.eq.s32.totalorder %s11, 1
    %p124 = por %p122, %p123
    %p125 = scmp.ne.s32.totalorder %s117, %s120
    %p126 = scmp.eq.s32.totalorder %s11, 0
    %p127 = por %p125, %p126
    %p128 = scmp.ne.s32.totalorder %s117, %s120
    %p129 = scmp.eq.s32.totalorder %s16, 1
    %p130 = por %p128, %p129
    %p131 = scmp.ne.s32.totalorder %s120, %s121
    %p132 = scmp.eq.s32.totalorder %s16, 0
    %p133 = por %p131, %p132
    %p134 = scmp.ne.s32.totalorder %s120, %s121
    %p135 = scmp.eq.s32.totalorder %s17, 1
    %p136 = por %p134, %p135
    %p138 = scmp.ne.s32.totalorder %s121, %s137
    %p139 = scmp.eq.s32.totalorder %s17, 0
    %p140 = por %p138, %p139
    %s141 = ssub.s32 %s18, %s30
    %s142 = ssub.s32 %s19, %s26
    %s143 = sor.u32 %s141, %s142
    %p144 = scmp.eq.s32.totalorder %s143, 0
    %s146 = sadd.s32 %s145, 1
    %s147 = scalar_select %p144, %s145, %s146
    %p150 = pneg %p144
    %p151 = scmp.eq.s32.totalorder %s11, 1
    %p152 = por %p150, %p151
    %p153 = scmp.ne.s32.totalorder %s145, %s148
    %p154 = scmp.eq.s32.totalorder %s11, 0
    %p155 = por %p153, %p154
    %p156 = scmp.ne.s32.totalorder %s145, %s148
    %p157 = scmp.eq.s32.totalorder %s16, 1
    %p158 = por %p156, %p157
    %p159 = scmp.ne.s32.totalorder %s148, %s149
    %p160 = scmp.eq.s32.totalorder %s16, 0
    %p161 = por %p159, %p160
    %p162 = scmp.ne.s32.totalorder %s148, %s149
    %p163 = scmp.eq.s32.totalorder %s17, 1
    %p164 = por %p162, %p163
    %p166 = scmp.ne.s32.totalorder %s149, %s165
    %p167 = scmp.eq.s32.totalorder %s17, 0
    %p168 = por %p166, %p167
    %p169 = scmp.le.s32.totalorder 1, %s11
    %p170 = scmp.lt.s32.totalorder %s11, 3
    %p171 = pnand %p169, %p170
    %p172 = pneg %p171
    // Predicated region
    $region9: #{rotary_embeddings.1} parent=5 // pred_check
      _
    $region10: #{rotary_embeddings.1} parent=5 // pred_check_branch
      %174 = sbr.rel (%p171) target = $region12
    $region11: #{rotary_embeddings.1} parent=5 // pred_region
      %s175 = ssub.s32 %s11, 1
    $region12: #{rotary_embeddings.1} parent=5 // pred_fallthru
      _
    %p176 = scmp.lt.s32.totalorder %s11, 2
    // Predicated region
    $region13: #{rotary_embeddings.1} parent=5 // pred_check
      %p177 = pneg %p176
    $region14: #{rotary_embeddings.1} parent=5 // pred_check_branch
      %179 = sbr.rel (%p177) target = $region16
    $region15: #{rotary_embeddings.1} parent=5 // pred_region
      // Predicated region
      $region17: #{rotary_embeddings.1} parent=15 // pred_check
        %p180 = pneg %p45
      $region18: #{rotary_embeddings.1} parent=15 // pred_check_branch
        %182 = sbr.rel (%p180) target = $region20
      $region19: #{rotary_embeddings.1} parent=15 // pred_region
        %p183 = scmp.lt.s32.totalorder %s18, 0
        %s184 = scalar_select %p183, %s18, 0
        %p185 = scmp.lt.s32.totalorder %s19, 1
        %s186 = scalar_select %p185, %s19, 1
        %s187 = smul.addr %s184, 2
        %s188 = sadd.s32 %s186, %s187
        %s189 = smul.addr %s188, 8
        %s190 = scalar_lea.vmem %s0, %s189
      $region20: #{rotary_embeddings.1} parent=15 // pred_fallthru
        _
      // Predicated region
      $region21: #{rotary_embeddings.1} parent=15 // pred_check
        %p191 = pneg %p73
      $region22: #{rotary_embeddings.1} parent=15 // pred_check_branch
        %193 = sbr.rel (%p191) target = $region24
      $region23: #{rotary_embeddings.1} parent=15 // pred_region
        %p194 = scmp.lt.s32.totalorder %s18, 0
        %s195 = scalar_select %p194, %s18, 0
        %p196 = scmp.lt.s32.totalorder %s19, 1
        %s197 = scalar_select %p196, %s19, 1
        %s198 = smul.addr %s195, 2
        %s199 = sadd.s32 %s197, %s198
        %s200 = smul.addr %s199, 8
        %s201 = scalar_lea.vmem %s1, %s200
      $region24: #{rotary_embeddings.1} parent=15 // pred_fallthru
        _
      // Predicated region
      $region25: #{rotary_embeddings.1} parent=15 // pred_check
        %p202 = pneg %p99
      $region26: #{rotary_embeddings.1} parent=15 // pred_check_branch
        %204 = sbr.rel (%p202) target = $region28
      $region27: #{rotary_embeddings.1} parent=15 // pred_region
        %p205 = scmp.lt.s32.totalorder %s19, 1
        %s206 = scalar_select %p205, %s19, 1
        %s207 = smul.addr %s206, 4
        %s208 = scalar_lea.vmem %s2, %s207
      $region28: #{rotary_embeddings.1} parent=15 // pred_fallthru
        _
    $region16: #{rotary_embeddings.1} parent=5 // pred_fallthru
      _
    %p209 = scmp.le.s32.totalorder 1, %s11
    %p210 = scmp.lt.s32.totalorder %s11, 3
    %p211 = pnand %p209, %p210
    %p212 = pneg %p211
    // Predicated region
    $region29: #{rotary_embeddings.1} parent=5 // pred_check
      _
    $region30: #{rotary_embeddings.1} parent=5 // pred_check_branch
      %214 = sbr.rel (%p211) target = $region32
    $region31: #{rotary_embeddings.1} parent=5 // pred_region
      %s215 = ssub.s32 %s11, 1
      %p216 = scmp.lt.s32.totalorder %s20, 0
      %s217 = scalar_select %p216, %s20, 0
      %p218 = scmp.lt.s32.totalorder %s21, 1
      %s219 = scalar_select %p218, %s21, 1
      %s220 = smul.addr %s217, 2
      %s221 = sadd.s32 %s219, %s220
      %s222 = smul.addr %s221, 8
      %s223 = scalar_lea.vmem %s0, %s222
      %p224 = pneg %p51
      %p225 = pneg %p48
      %p226 = scmp.lt.s32.totalorder %s20, 0
      %s227 = scalar_select %p226, %s20, 0
      %p228 = scmp.lt.s32.totalorder %s21, 1
      %s229 = scalar_select %p228, %s21, 1
      %s230 = smul.addr %s227, 2
      %s231 = sadd.s32 %s229, %s230
      %s232 = smul.addr %s231, 8
      %s233 = scalar_lea.vmem %s1, %s232
      %p234 = pneg %p79
      %p235 = pneg %p76
      %p236 = scmp.lt.s32.totalorder %s21, 1
      %s237 = scalar_select %p236, %s21, 1
      %s238 = smul.addr %s237, 4
      %s239 = scalar_lea.vmem %s2, %s238
      %p240 = pneg %p105
      %p241 = pneg %p102
      %p242 = pneg %p133
      %p243 = pneg %p130
      %p244 = scmp.lt.s32.totalorder %s20, 0
      %s245 = scalar_select %p244, %s20, 0
      %p246 = scmp.lt.s32.totalorder %s21, 1
      %s247 = scalar_select %p246, %s21, 1
      %s248 = smul.addr %s245, 2
      %s249 = sadd.s32 %s247, %s248
      %s250 = smul.addr %s249, 8
      %s251 = scalar_lea.vmem %s3, %s250
      %p252 = pneg %p161
      %p253 = pneg %p158
      %p254 = scmp.lt.s32.totalorder %s20, 0
      %s255 = scalar_select %p254, %s20, 0
      %p256 = scmp.lt.s32.totalorder %s21, 1
      %s257 = scalar_select %p256, %s21, 1
      %s258 = smul.addr %s255, 2
      %s259 = sadd.s32 %s257, %s258
      %s260 = smul.addr %s259, 8
      %s261 = scalar_lea.vmem %s4, %s260
      %p262 = scmp.lt.s32.totalorder %s20, 0
      %s263 = scalar_select %p262, %s20, 0
      %p264 = scmp.lt.s32.totalorder %s21, 1
      %s265 = scalar_select %p264, %s21, 1
      %s266 = smul.addr %s263, 2
      %s267 = sadd.s32 %s265, %s266
      %s268 = smul.addr %s267, 8
      %s269 = scalar_lea.vmem %s0, %s268
      %p270 = scmp.lt.s32.totalorder %s20, 0
      %s271 = scalar_select %p270, %s20, 0
      %p272 = scmp.lt.s32.totalorder %s21, 1
      %s273 = scalar_select %p272, %s21, 1
      %s274 = smul.addr %s271, 2
      %s275 = sadd.s32 %s273, %s274
      %s276 = smul.addr %s275, 8
      %s277 = scalar_lea.vmem %s1, %s276
      %p278 = scmp.lt.s32.totalorder %s21, 1
      %s279 = scalar_select %p278, %s21, 1
      %s280 = smul.addr %s279, 4
      %s281 = scalar_lea.vmem %s2, %s280
      %p282 = scmp.lt.s32.totalorder %s20, 0
      %s283 = scalar_select %p282, %s20, 0
      %p284 = scmp.lt.s32.totalorder %s21, 1
      %s285 = scalar_select %p284, %s21, 1
      %s286 = smul.addr %s283, 2
      %s287 = sadd.s32 %s285, %s286
      %s288 = smul.addr %s287, 8
      %s289 = scalar_lea.vmem %s3, %s288
      %p290 = scmp.lt.s32.totalorder %s20, 0
      %s291 = scalar_select %p290, %s20, 0
      %p292 = scmp.lt.s32.totalorder %s21, 1
      %s293 = scalar_select %p292, %s21, 1
      %s294 = smul.addr %s291, 2
      %s295 = sadd.s32 %s293, %s294
      %s296 = smul.addr %s295, 8
      %s297 = scalar_lea.vmem %s4, %s296
      %v298 = vld [vmem:[%s281] sm:$0x7]
      %v299 = vld [vmem:[%s269] sm:$0xff]
      %300 = vrot.lane.b32.xlu0 %v299, 127
      %v301 = vpop.permute.xlu0 %300
      %302 = vrot.lane.b32.xlu0 %v299, 1
      %v303 = vpop.permute.xlu0 %302
      %v304 = vlaneseq
      %v305 = vshrl.u32 %v304, 7
      %v306 = vsub.s32 0, %v305
      %v307 = vrot.slane %v298, %v306
      %v308 = vmul.f32 %v299, %v307
      %v309 = vlaneseq
      %v310 = vshrl.u32 %v309, 7
      %v311 = vsub.s32 1, %v310
      %v312 = vrot.slane %v298, %v311
      %v313 = vmul.f32 %v301, %v312
      %v314 = vadd.f32 %v308, %v313
      %v315 = vlaneseq
      %v316 = vshrl.u32 %v315, 7
      %v317 = vsub.s32 2, %v316
      %v318 = vrot.slane %v298, %v317
      %v319 = vmul.f32 %v303, %v318
      %v320 = vadd.f32 %v314, %v319
      %321 = vst [vmem:[%s289] sm:$0xff] %v320
      %v322 = vld [vmem:[%s277] sm:$0xff]
      %323 = vrot.lane.b32.xlu0 %v322, 127
      %v324 = vpop.permute.xlu0 %323
      %325 = vrot.lane.b32.xlu0 %v322, 1
      %v326 = vpop.permute.xlu0 %325
      %v327 = vmul.f32 %v322, %v307
      %v328 = vmul.f32 %v324, %v312
      %v329 = vadd.f32 %v327, %v328
      %v330 = vmul.f32 %v326, %v318
      %v331 = vadd.f32 %v329, %v330
      %332 = vst [vmem:[%s297] sm:$0xff] %v331
      %p333 = scmp.lt.s32.totalorder %s20, 0
      %s334 = scalar_select %p333, %s20, 0
      %p335 = scmp.lt.s32.totalorder %s21, 1
      %s336 = scalar_select %p335, %s21, 1
      %s337 = smul.addr %s334, 2
      %s338 = sadd.s32 %s336, %s337
      %s339 = smul.addr %s338, 8
      %s340 = scalar_lea.vmem %s3, %s339
      %p341 = scmp.lt.s32.totalorder %s20, 0
      %s342 = scalar_select %p341, %s20, 0
      %p343 = scmp.lt.s32.totalorder %s21, 1
      %s344 = scalar_select %p343, %s21, 1
      %s345 = smul.addr %s342, 2
      %s346 = sadd.s32 %s344, %s345
      %s347 = smul.addr %s346, 8
      %s348 = scalar_lea.vmem %s4, %s347
      // Predicated region
      $region33: #{rotary_embeddings.1} parent=31 // pred_check
        %p349 = pneg %p130
      $region34: #{rotary_embeddings.1} parent=31 // pred_check_branch
        %351 = sbr.rel (%p349) target = $region36
      $region35: #{rotary_embeddings.1} parent=31 // pred_region
        _
      $region36: #{rotary_embeddings.1} parent=31 // pred_fallthru
        _
      // Predicated region
      $region37: #{rotary_embeddings.1} parent=31 // pred_check
        %p352 = pneg %p158
      $region38: #{rotary_embeddings.1} parent=31 // pred_check_branch
        %354 = sbr.rel (%p352) target = $region40
      $region39: #{rotary_embeddings.1} parent=31 // pred_region
        _
      $region40: #{rotary_embeddings.1} parent=31 // pred_fallthru
        _
    $region32: #{rotary_embeddings.1} parent=5 // pred_fallthru
      _
    %p355 = scmp.le.s32.totalorder 2, %s11
    // Predicated region
    $region41: #{rotary_embeddings.1} parent=5 // pred_check
      %p356 = pneg %p355
    $region42: #{rotary_embeddings.1} parent=5 // pred_check_branch
      %358 = sbr.rel (%p356) target = $region44
    $region43: #{rotary_embeddings.1} parent=5 // pred_region
      %s359 = ssub.s32 %s11, 2
      // Predicated region
      $region45: #{rotary_embeddings.1} parent=43 // pred_check
        %p360 = pneg %p136
      $region46: #{rotary_embeddings.1} parent=43 // pred_check_branch
        %362 = sbr.rel (%p360) target = $region48
      $region47: #{rotary_embeddings.1} parent=43 // pred_region
        %p363 = scmp.lt.s32.totalorder %s22, 0
        %s364 = scalar_select %p363, %s22, 0
        %p365 = scmp.lt.s32.totalorder %s23, 1
        %s366 = scalar_select %p365, %s23, 1
        %s367 = smul.addr %s364, 2
        %s368 = sadd.s32 %s366, %s367
        %s369 = smul.addr %s368, 8
        %s370 = scalar_lea.vmem %s3, %s369
      $region48: #{rotary_embeddings.1} parent=43 // pred_fallthru
        _
      // Predicated region
      $region49: #{rotary_embeddings.1} parent=43 // pred_check
        %p371 = pneg %p164
      $region50: #{rotary_embeddings.1} parent=43 // pred_check_branch
        %373 = sbr.rel (%p371) target = $region52
      $region51: #{rotary_embeddings.1} parent=43 // pred_region
        %p374 = scmp.lt.s32.totalorder %s22, 0
        %s375 = scalar_select %p374, %s22, 0
        %p376 = scmp.lt.s32.totalorder %s23, 1
        %s377 = scalar_select %p376, %s23, 1
        %s378 = smul.addr %s375, 2
        %s379 = sadd.s32 %s377, %s378
        %s380 = smul.addr %s379, 8
        %s381 = scalar_lea.vmem %s4, %s380
      $region52: #{rotary_embeddings.1} parent=43 // pred_fallthru
        _
    $region44: #{rotary_embeddings.1} parent=5 // pred_fallthru
      _
  $region6: #{rotary_embeddings.1} parent=0 // loop_footer
    %s15 = sadd.s32 1, %s11
  $region7: #{rotary_embeddings.1} parent=0 // loop_footer_branch
    %10 = sbr.rel target = $region3
  $region8: #{rotary_embeddings.1} parent=0 // loop_exit
    _

</llo_original>
